<compile_context>
chip_gen: v5e
topology: v5e:2x2
jax: 0.10.0
libtpu: 0.0.40
codegen_flags: <defaults>
</compile_context>

<pallas_src>
import jax
import jax.numpy as jnp
from jax.experimental import pallas as pl
from jax.experimental.pallas import tpu as pltpu

_BN_EPS = 1e-5  # nn.BatchNorm2d default eps


# ------------------------------------------------------------------ folding (plain JAX)

def fold_conv_bn(conv_w, conv_b, bn_g, bn_b, bn_mean, bn_var, eps=_BN_EPS):
    """Fold eval-mode BatchNorm into a 1x1 conv. conv_w is (Cout, Cin)."""
    s = bn_g / jnp.sqrt(bn_var + eps)
    w = conv_w * s[:, None]
    b = (conv_b - bn_mean) * s + bn_b
    return w, b


# ------------------------------------------------------------------ Pallas kernel

def _skip_fused_kernel(x_ref, m_ref, b_ref, o_ref):
    """o = M @ x + cbias + x for one channels-first (C, ts) tile.

    M (composed conv+BN weight) arrives bf16 for MXU throughput; accumulation, bias add
    and the residual are f32.
    """
    x = x_ref[0]                                              # (C, ts) f32
    y = jnp.dot(m_ref[...], x.astype(jnp.bfloat16),
                preferred_element_type=jnp.float32)           # MXU, f32 accumulate
    o_ref[0] = (y + b_ref[...] + x).astype(o_ref.dtype)       # f32 bias + residual


def _spatial_tile(s, n_batch):
    """Lane-dense (multiple-of-128) spatial tile. Prefer a tile giving >= 4 total grid
    steps so a v7x megacore gets >= 2 pipelined steps per TensorCore."""
    if s <= 128:
        return s                       # full-array block (legal for any size, stores masked)
    for ts in (1024, 512, 256, 128):
        if ts <= s and n_batch * pl.cdiv(s, ts) >= 4:
            return ts
    return 128


def skip_branch_fused(x_ncs, m_w, cbias):
    """x_ncs: (N, C, S) f32 channels-first; m_w: (C, C) bf16; cbias: (C, 1) f32."""
    n, c, s = x_ncs.shape
    ts = _spatial_tile(s, n)
    grid = (n, pl.cdiv(s, ts))         # partial last block handled by Pallas (no jnp.pad)
    return pl.pallas_call(
        _skip_fused_kernel,
        out_shape=jax.ShapeDtypeStruct((n, c, s), jnp.float32),
        grid=grid,
        in_specs=[
            pl.BlockSpec((1, c, ts), lambda i, j: (i, 0, j)),   # x tile (streams over HBM)
            pl.BlockSpec((c, c), lambda i, j: (0, 0)),          # composed weight (resident, bf16)
            pl.BlockSpec((c, 1), lambda i, j: (0, 0)),          # composed bias   (resident, f32)
        ],
        out_specs=pl.BlockSpec((1, c, ts), lambda i, j: (i, 0, j)),
        compiler_params=pltpu.CompilerParams(
            dimension_semantics=("parallel", "parallel")),
    )(x_ncs, m_w, cbias)


# ------------------------------------------------------------------ module forward

def skip_blocks_forward(params, x1, x2):
    """SkipBlocks.forward (eval-mode BN). x1, x2: NCHW f32. Returns (z1, z2) in NCHW."""
    c = x1.shape[1]

    ga, gb = fold_conv_bn(params["g_w"], params["g_b"],
                          params["g_bn_g"], params["g_bn_b"],
                          params["g_bn_mean"], params["g_bn_var"])
    wa, wb = fold_conv_bn(params["w_w"], params["w_b"],
                          params["w_bn_g"], params["w_bn_b"],
                          params["w_bn_mean"], params["w_bn_var"])
    # Fold the two 1x1 convs into one GEMM:  W(g(x)) = (Wb Wa) x + (Wb a + b)
    m_w = (wa @ ga).astype(jnp.bfloat16)                      # (C, C) composed weight
    cbias = (wa @ gb + wb).reshape(c, 1).astype(jnp.float32)  # (C, 1) composed bias

    def branch(x):
        n, cc, h, w = x.shape
        out = skip_branch_fused(x.reshape(n, cc, h * w), m_w, cbias)  # free reshape
        return out.reshape(n, cc, h, w)

    return branch(x1), branch(x2)


# ------------------------------------------------------------------ pure-JAX reference

def skip_blocks_reference(params, x1, x2):
    """Unfused f32 reference: conv -> BN -> conv -> BN -> residual, per branch."""
    def conv_bn(x, w, b, g, beta, mean, var):
        y = jnp.einsum("oc,nchw->nohw", w, x) + b[None, :, None, None]
        s = g / jnp.sqrt(var + _BN_EPS)
        return (y - mean[None, :, None, None]) * s[None, :, None, None] \
               + beta[None, :, None, None]

    def branch(x):
        gx = conv_bn(x, params["g_w"], params["g_b"], params["g_bn_g"],
                     params["g_bn_b"], params["g_bn_mean"], params["g_bn_var"])
        wy = conv_bn(gx, params["w_w"], params["w_b"], params["w_bn_g"],
                     params["w_bn_b"], params["w_bn_mean"], params["w_bn_var"])
        return wy + x

    return branch(x1), branch(x2)


# ------------------------------------------------------------------ parameter init

def init_params(key, c):
    keys = iter(jax.random.split(key, 8))

    def w(shape, scale=0.05):
        return jax.random.normal(next(keys), shape, jnp.float32) * scale

    # NOTE: the PyTorch __init__ zero-inits both BatchNorm affine params, making the module
    # an exact identity at init. Small random BN affines are used here so the conv+BN+residual
    # path is actually exercised; running stats keep their defaults (mean=0, var=1).
    return {
        "g_w": w((c, c)), "g_b": w((c,)),
        "g_bn_g": w((c,), 0.5), "g_bn_b": w((c,)),
        "g_bn_mean": jnp.zeros((c,), jnp.float32),
        "g_bn_var": jnp.ones((c,), jnp.float32),
        "w_w": w((c, c)), "w_b": w((c,)),
        "w_bn_g": w((c,), 0.5), "w_bn_b": w((c,)),
        "w_bn_mean": jnp.zeros((c,), jnp.float32),
        "w_bn_var": jnp.ones((c,), jnp.float32),
    }


# ------------------------------------------------------------------ main

if __name__ == "__main__":
    key = jax.random.PRNGKey(0)
    kp, k1, k2 = jax.random.split(key, 3)

    B, C, H, W = 2, 128, 16, 16          # C=128 sublane-dense, H*W=256 lane-dense
    params = init_params(kp, C)
    x1 = jax.random.uniform(k1, (B, C, H, W), jnp.float32)
    x2 = jax.random.uniform(k2, (B, C, H, W), jnp.float32)

    fwd = jax.jit(skip_blocks_forward)
    z1, z2 = fwd(params, x1, x2)
    jax.block_until_ready((z1, z2))

    # Loose-tolerance sanity check vs. an f32 pure-JAX reference (kernel uses a bf16-composed
    # weight on the MXU, f32 everywhere else).
    r1, r2 = skip_blocks_reference(params, x1, x2)
    err = max(float(jnp.max(jnp.abs(z1 - r1))), float(jnp.max(jnp.abs(z2 - r2))))
    if err > 5e-2:
        raise AssertionError(f"kernel mismatch vs reference: max abs err {err}")

    print("KERNEL_OK")
</pallas_src>

<mosaic_0001>
module attributes {stable_mosaic.version = 11 : i64} {
  func.func @_skip_fused_kernel(%arg0: i32, %arg1: i32, %arg2: memref<1x128x128xf32, #tpu.memory_space<vmem>>, %arg3: memref<128x128xbf16, #tpu.memory_space<vmem>>, %arg4: memref<128x1xf32, #tpu.memory_space<vmem>>, %arg5: memref<1x128x128xf32, #tpu.memory_space<vmem>>) attributes {dimension_semantics = [#tpu.dimension_semantics<parallel>, #tpu.dimension_semantics<parallel>], iteration_bounds = array<i64: 2, 2>, scalar_prefetch = 0 : i64, scratch_operands = 0 : i64, tpu.core_type = #tpu.core_type<tc>, window_params = [{transform_indices = @transform_0, window_bounds = array<i64: 1, 128, 128>}, {pipeline_mode = #tpu.pipeline_mode<synchronous>, transform_indices = @transform_1, window_bounds = array<i64: 128, 128>}, {pipeline_mode = #tpu.pipeline_mode<synchronous>, transform_indices = @transform_2, window_bounds = array<i64: 128, 1>}, {transform_indices = @transform_3, window_bounds = array<i64: 1, 128, 128>}]} {
    %c0 = arith.constant 0 : index
    %c0_0 = arith.constant 0 : index
    %c0_1 = arith.constant 0 : index
    %0 = vector.load %arg2[%c0, %c0_0, %c0_1] : memref<1x128x128xf32, #tpu.memory_space<vmem>>, vector<1x128x128xf32>
    %1 = vector.shape_cast %0 : vector<1x128x128xf32> to vector<128x128xf32>
    %c0_2 = arith.constant 0 : index
    %c0_3 = arith.constant 0 : index
    %2 = vector.load %arg3[%c0_2, %c0_3] : memref<128x128xbf16, #tpu.memory_space<vmem>>, vector<128x128xbf16>
    %3 = arith.truncf %1 : vector<128x128xf32> to vector<128x128xbf16>
    %cst = arith.constant dense<0.000000e+00> : vector<128x128xf32>
    %4 = tpu.matmul %2, %3, %cst {dimension_numbers = #tpu.dot_dimension_numbers<[1], [0], [0], [1], [0, 0, 1, 1], [], []>} : vector<128x128xbf16>, vector<128x128xbf16>, vector<128x128xf32> -> vector<128x128xf32>
    %c0_4 = arith.constant 0 : index
    %c0_5 = arith.constant 0 : index
    %5 = vector.load %arg4[%c0_4, %c0_5] : memref<128x1xf32, #tpu.memory_space<vmem>>, vector<128x1xf32>
    %6 = vector.broadcast %5 : vector<128x1xf32> to vector<128x128xf32>
    %7 = arith.addf %4, %6 : vector<128x128xf32>
    %8 = arith.addf %7, %1 : vector<128x128xf32>
    %c0_6 = arith.constant 0 : index
    %c0_7 = arith.constant 0 : index
    %c0_8 = arith.constant 0 : index
    %9 = vector.load %arg5[%c0_6, %c0_7, %c0_8] : memref<1x128x128xf32, #tpu.memory_space<vmem>>, vector<1x128x128xf32>
    %10 = vector.shape_cast %9 : vector<1x128x128xf32> to vector<128x128xf32>
    %11 = vector.shape_cast %8 : vector<128x128xf32> to vector<1x128x128xf32>
    tpu.vector_store %arg5[%c0_6, %c0_7, %c0_8], %11 {strides = array<i32>} : memref<1x128x128xf32, #tpu.memory_space<vmem>>, vector<1x128x128xf32>,
    return
  }
  func.func @transform_0(%arg0: i32, %arg1: i32) -> (i32, i32, i32) {
    %c0_i32 = arith.constant 0 : i32
    %c0_i32_0 = arith.constant 0 : i32
    return %arg0, %c0_i32, %arg1 : i32, i32, i32
  }
  func.func @transform_1(%arg0: i32, %arg1: i32) -> (i32, i32) {
    %c0_i32 = arith.constant 0 : i32
    %c0_i32_0 = arith.constant 0 : i32
    %c0_i32_1 = arith.constant 0 : i32
    return %c0_i32, %c0_i32_0 : i32, i32
  }
  func.func @transform_2(%arg0: i32, %arg1: i32) -> (i32, i32) {
    %c0_i32 = arith.constant 0 : i32
    %c0_i32_0 = arith.constant 0 : i32
    %c0_i32_1 = arith.constant 0 : i32
    return %c0_i32, %c0_i32_0 : i32, i32
  }
  func.func @transform_3(%arg0: i32, %arg1: i32) -> (i32, i32, i32) {
    %c0_i32 = arith.constant 0 : i32
    %c0_i32_0 = arith.constant 0 : i32
    return %arg0, %c0_i32, %arg1 : i32, i32, i32
  }
}

</mosaic_0001>

<llo_original>
// kernel: skip_blocks_forward.2
$region0: #{skip_blocks_forward.2}
  #allocation0 [shape = 'u32[]', space=smem, size = 0x4, offset = 0x4, fixed_abs, tag = 'smem constant byte address 0x4 - core index']
  #allocation1 [shape = 'u32[72,128]{1,0:T(1,128)}', space=vmem, size = 0x9000, scoped, tag = 'internal scratch']
  %s0 = inlined_call_operand.vmem [shape: f32[2,128,256], index: 0, kind: input, shape index: {}]
  %s1 = inlined_call_operand.vmem [shape: bf16[128,128], index: 1, kind: input, shape index: {}]
  %s2 = inlined_call_operand.vmem [shape: f32[128,1], index: 2, kind: input, shape index: {}]
  %s3 = inlined_call_operand.vmem [shape: f32[2,128,256], index: 3, kind: output, shape index: {}]
  %s4 = sld [smem:[#allocation0]]
  $region117: #{skip_blocks_forward.2} parent=0
    _
  %s6 = ssub.s32 1, %s4
  %s7 = scalar_select 0, %s6, %s4
  $region1: #{skip_blocks_forward.2} parent=0
    #allocation2 [shape = 'u8[131072]{0}', space=vmem, size = 0x20000, scoped, tag = 'input window, operand 0']
    #allocation3 [shape = 'u8[131072]{0}', space=vmem, size = 0x20000, scoped, tag = 'output window, operand 0']
    loop: start=0, step=1, limit=6
    $region2: #{skip_blocks_forward.2} parent=1 // loop_pre_header
      _
    $region3: #{skip_blocks_forward.2} parent=1 // loop_header
      %s9 = sphi 0, %s13
      %p10 = scmp.ge.s32.totalorder %s9, 6
      %s16 = sphi 0, %s28
      %s17 = sphi 0, %s24
      %s18 = sphi 0, %s16
      %s19 = sphi 0, %s17
      %s20 = sphi 0, %s18
      %s21 = sphi 0, %s19
      %s33 = sphi 0, %s35
      %s36 = sphi 0, %s33
      %s37 = sphi 0, %s36
      %s53 = sphi 0, %s37
      %s57 = sphi 0, %s57
      %s59 = sphi 0, %s57
      %s60 = sphi 0, %s59
      %s74 = sphi 0, %s60
      %s78 = sphi 0, %s78
      %s80 = sphi 0, %s78
      %s81 = sphi 0, %s80
      %s95 = sphi 0, %s81
      %s103 = sphi 0, %s105
      %s106 = sphi 0, %s103
      %s107 = sphi 0, %s106
      %s123 = sphi 0, %s107
    $region4: #{skip_blocks_forward.2} parent=1 // loop_header_branch
      %12 = sbr.rel (%p10) target = $region8
    $region5: #{skip_blocks_forward.2} parent=1 // loop_body
      %s14 = ssub.s32 %s9, 1
      %s15 = ssub.s32 %s9, 2
      %s22 = sadd.s32 1, %s17
      %p23 = scmp.ge.s32.totalorder %s22, 2
      %s24 = scalar_select %p23, 0, %s22
      %s25 = sadd.s32 1, %s16
      %s26 = scalar_select %p23, %s25, %s16
      %p27 = scmp.ge.s32.totalorder %s26, 2
      %s28 = scalar_select %p27, 0, %s26
      %s29 = ssub.s32 %s16, %s28
      %s30 = ssub.s32 %s17, %s24
      %s31 = sor.u32 %s29, %s30
      %p32 = scmp.eq.s32.totalorder %s31, 0
      %s34 = sadd.s32 %s33, 1
      %s35 = scalar_select %p32, %s33, %s34
      %p38 = pneg %p32
      %p39 = scmp.eq.s32.totalorder %s9, 3
      %p40 = por %p38, %p39
      %p41 = scmp.ne.s32.totalorder %s33, %s36
      %p42 = scmp.eq.s32.totalorder %s9, 0
      %p43 = por %p41, %p42
      %p44 = scmp.ne.s32.totalorder %s33, %s36
      %p45 = scmp.eq.s32.totalorder %s14, 3
      %p46 = por %p44, %p45
      %p47 = scmp.ne.s32.totalorder %s36, %s37
      %p48 = scmp.eq.s32.totalorder %s14, 0
      %p49 = por %p47, %p48
      %p50 = scmp.ne.s32.totalorder %s36, %s37
      %p51 = scmp.eq.s32.totalorder %s15, 3
      %p52 = por %p50, %p51
      %p54 = scmp.ne.s32.totalorder %s37, %s53
      %p55 = scmp.eq.s32.totalorder %s15, 0
      %p56 = por %p54, %p55
      %s58 = sadd.s32 %s57, 1
      %p61 = scmp.eq.s32.totalorder %s9, 3
      %p62 = scmp.ne.s32.totalorder %s57, %s59
      %p63 = scmp.eq.s32.totalorder %s9, 0
      %p64 = por %p62, %p63
      %p65 = scmp.ne.s32.totalorder %s57, %s59
      %p66 = scmp.eq.s32.totalorder %s14, 3
      %p67 = por %p65, %p66
      %p68 = scmp.ne.s32.totalorder %s59, %s60
      %p69 = scmp.eq.s32.totalorder %s14, 0
      %p70 = por %p68, %p69
      %p71 = scmp.ne.s32.totalorder %s59, %s60
      %p72 = scmp.eq.s32.totalorder %s15, 3
      %p73 = por %p71, %p72
      %p75 = scmp.ne.s32.totalorder %s60, %s74
      %p76 = scmp.eq.s32.totalorder %s15, 0
      %p77 = por %p75, %p76
      %s79 = sadd.s32 %s78, 1
      %p82 = scmp.eq.s32.totalorder %s9, 3
      %p83 = scmp.ne.s32.totalorder %s78, %s80
      %p84 = scmp.eq.s32.totalorder %s9, 0
      %p85 = por %p83, %p84
      %p86 = scmp.ne.s32.totalorder %s78, %s80
      %p87 = scmp.eq.s32.totalorder %s14, 3
      %p88 = por %p86, %p87
      %p89 = scmp.ne.s32.totalorder %s80, %s81
      %p90 = scmp.eq.s32.totalorder %s14, 0
      %p91 = por %p89, %p90
      %p92 = scmp.ne.s32.totalorder %s80, %s81
      %p93 = scmp.eq.s32.totalorder %s15, 3
      %p94 = por %p92, %p93
      %p96 = scmp.ne.s32.totalorder %s81, %s95
      %p97 = scmp.eq.s32.totalorder %s15, 0
      %p98 = por %p96, %p97
      %s99 = ssub.s32 %s16, %s28
      %s100 = ssub.s32 %s17, %s24
      %s101 = sor.u32 %s99, %s100
      %p102 = scmp.eq.s32.totalorder %s101, 0
      %s104 = sadd.s32 %s103, 1
      %s105 = scalar_select %p102, %s103, %s104
      %p108 = pneg %p102
      %p109 = scmp.eq.s32.totalorder %s9, 3
      %p110 = por %p108, %p109
      %p111 = scmp.ne.s32.totalorder %s103, %s106
      %p112 = scmp.eq.s32.totalorder %s9, 0
      %p113 = por %p111, %p112
      %p114 = scmp.ne.s32.totalorder %s103, %s106
      %p115 = scmp.eq.s32.totalorder %s14, 3
      %p116 = por %p114, %p115
      %p117 = scmp.ne.s32.totalorder %s106, %s107
      %p118 = scmp.eq.s32.totalorder %s14, 0
      %p119 = por %p117, %p118
      %p120 = scmp.ne.s32.totalorder %s106, %s107
      %p121 = scmp.eq.s32.totalorder %s15, 3
      %p122 = por %p120, %p121
      %p124 = scmp.ne.s32.totalorder %s107, %s123
      %p125 = scmp.eq.s32.totalorder %s15, 0
      %p126 = por %p124, %p125
      %p127 = scmp.le.s32.totalorder 1, %s9
      %p128 = scmp.lt.s32.totalorder %s9, 5
      %p129 = pnand %p127, %p128
      %p130 = pneg %p129
      // Predicated region
      $region9: #{skip_blocks_forward.2} parent=5 // pred_check
        _
      $region10: #{skip_blocks_forward.2} parent=5 // pred_check_branch
        %132 = sbr.rel (%p129) target = $region12
      $region11: #{skip_blocks_forward.2} parent=5 // pred_region
        %s133 = ssub.s32 %s9, 1
        // Predicated region
        $region13: #{skip_blocks_forward.2} parent=11 // pred_check
          %p134 = pneg %p70
        $region14: #{skip_blocks_forward.2} parent=11 // pred_check_branch
          %136 = sbr.rel (%p134) target = $region16
        $region15: #{skip_blocks_forward.2} parent=11 // pred_region
          _
        $region16: #{skip_blocks_forward.2} parent=11 // pred_fallthru
          _
        // Predicated region
        $region17: #{skip_blocks_forward.2} parent=11 // pred_check
          %p137 = pneg %p91
        $region18: #{skip_blocks_forward.2} parent=11 // pred_check_branch
          %139 = sbr.rel (%p137) target = $region20
        $region19: #{skip_blocks_forward.2} parent=11 // pred_region
          _
        $region20: #{skip_blocks_forward.2} parent=11 // pred_fallthru
          _
      $region12: #{skip_blocks_forward.2} parent=5 // pred_fallthru
        _
      %p140 = scmp.lt.s32.totalorder %s9, 4
      // Predicated region
      $region21: #{skip_blocks_forward.2} parent=5 // pred_check
        %p141 = pneg %p140
      $region22: #{skip_blocks_forward.2} parent=5 // pred_check_branch
        %143 = sbr.rel (%p141) target = $region24
      $region23: #{skip_blocks_forward.2} parent=5 // pred_region
        // Predicated region
        $region25: #{skip_blocks_forward.2} parent=23 // pred_check
          %p144 = pneg %p43
        $region26: #{skip_blocks_forward.2} parent=23 // pred_check_branch
          %146 = sbr.rel (%p144) target = $region28
        $region27: #{skip_blocks_forward.2} parent=23 // pred_region
          %s147 = sand.u32 %s33, 1
          %s148 = sand.u32 %s33, 1
          %s149 = smul.addr %s148, 128
          %s150 = scalar_lea.vmem [#allocation2], %s149
          %s151 = smul.addr %s16, 32
          %s152 = sadd.s32 %s17, %s151
          %s153 = smul.addr %s152, 8
          %s154 = scalar_lea.vmem %s0, %s153
          // Predicated region
          $region29: #{skip_blocks_forward.2} parent=27 // pred_check
            _
          $region30: #{skip_blocks_forward.2} parent=27 // pred_check_branch
            %156 = sbr.rel (0) target = $region32
          $region31: #{skip_blocks_forward.2} parent=27 // pred_region
            // Predicated region
            $region33: #{skip_blocks_forward.2} parent=31 // pred_check
              _
            $region34: #{skip_blocks_forward.2} parent=31 // pred_check_branch
              %158 = sbr.rel (0) target = $region36
            $region35: #{skip_blocks_forward.2} parent=31 // pred_region
              // Predicated region
              $region48: #{skip_blocks_forward.2} parent=35 // pred_check
                _
              $region49: #{skip_blocks_forward.2} parent=35 // pred_check_branch
                %204 = sbr.rel (0) target = $region51
              $region50: #{skip_blocks_forward.2} parent=35 // pred_region
                loop: start=0, step=1, limit=1
                $region52: #{skip_blocks_forward.2} parent=50 // loop_pre_header
                  _
                $region53: #{skip_blocks_forward.2} parent=50 // loop_header
                  %s206 = sphi 0, %s210
                  %p207 = scmp.ge.s32.totalorder %s206, 1
                  %s211 = sphi %s154, %s154
                  %s212 = sphi %s150, %s150
                $region54: #{skip_blocks_forward.2} parent=50 // loop_header_branch
                  %209 = sbr.rel (%p207) target = $region58
                $region55: #{skip_blocks_forward.2} parent=50 // loop_body
                  %v213 = vld [vmem:[%s211] sm:$0xff]
                  %214 = vst [vmem:[%s212] sm:$0xff] %v213
                  %v215 = vld [vmem:[%s211 + $0x10] sm:$0xff]
                  %216 = vst [vmem:[%s212 + $0x8] sm:$0xff] %v215
                  %v217 = vld [vmem:[%s211 + $0x20] sm:$0xff]
                  %218 = vst [vmem:[%s212 + $0x10] sm:$0xff] %v217
                  %v219 = vld [vmem:[%s211 + $0x30] sm:$0xff]
                  %220 = vst [vmem:[%s212 + $0x18] sm:$0xff] %v219
                  %v221 = vld [vmem:[%s211 + $0x40] sm:$0xff]
                  %222 = vst [vmem:[%s212 + $0x20] sm:$0xff] %v221
                  %v223 = vld [vmem:[%s211 + $0x50] sm:$0xff]
                  %224 = vst [vmem:[%s212 + $0x28] sm:$0xff] %v223
                  %v225 = vld [vmem:[%s211 + $0x60] sm:$0xff]
                  %226 = vst [vmem:[%s212 + $0x30] sm:$0xff] %v225
                  %v227 = vld [vmem:[%s211 + $0x70] sm:$0xff]
                  %228 = vst [vmem:[%s212 + $0x38] sm:$0xff] %v227
                  %v229 = vld [vmem:[%s211 + $0x80] sm:$0xff]
                  %230 = vst [vmem:[%s212 + $0x40] sm:$0xff] %v229
                  %v231 = vld [vmem:[%s211 + $0x90] sm:$0xff]
                  %232 = vst [vmem:[%s212 + $0x48] sm:$0xff] %v231
                  %v233 = vld [vmem:[%s211 + $0xa0] sm:$0xff]
                  %234 = vst [vmem:[%s212 + $0x50] sm:$0xff] %v233
                  %v235 = vld [vmem:[%s211 + $0xb0] sm:$0xff]
                  %236 = vst [vmem:[%s212 + $0x58] sm:$0xff] %v235
                  %v237 = vld [vmem:[%s211 + $0xc0] sm:$0xff]
                  %238 = vst [vmem:[%s212 + $0x60] sm:$0xff] %v237
                  %v239 = vld [vmem:[%s211 + $0xd0] sm:$0xff]
                  %240 = vst [vmem:[%s212 + $0x68] sm:$0xff] %v239
                  %v241 = vld [vmem:[%s211 + $0xe0] sm:$0xff]
                  %242 = vst [vmem:[%s212 + $0x70] sm:$0xff] %v241
                  %v243 = vld [vmem:[%s211 + $0xf0] sm:$0xff]
                  %244 = vst [vmem:[%s212 + $0x78] sm:$0xff] %v243
                $region56: #{skip_blocks_forward.2} parent=50 // loop_footer
                  %s210 = sadd.s32 1, %s206
                $region57: #{skip_blocks_forward.2} parent=50 // loop_footer_branch
                  %205 = sbr.rel target = $region53
                $region58: #{skip_blocks_forward.2} parent=50 // loop_exit
                  _
              $region51: #{skip_blocks_forward.2} parent=35 // pred_fallthru
                _
              // Predicated region
              $region59: #{skip_blocks_forward.2} parent=35 // pred_check
                _
              $region60: #{skip_blocks_forward.2} parent=35 // pred_check_branch
                %246 = sbr.rel target = $region62
              $region61: #{skip_blocks_forward.2} parent=35 // pred_region
                _
              $region62: #{skip_blocks_forward.2} parent=35 // pred_fallthru
                _
            $region36: #{skip_blocks_forward.2} parent=31 // pred_fallthru
              _
            // Predicated region
            $region37: #{skip_blocks_forward.2} parent=31 // pred_check
              _
            $region38: #{skip_blocks_forward.2} parent=31 // pred_check_branch
              %160 = sbr.rel target = $region40
            $region39: #{skip_blocks_forward.2} parent=31 // pred_region
              %s162 = ssub.s32 256, 1
              loop: start=0, step=1, limit=1
              $region41: #{skip_blocks_forward.2} parent=39 // loop_pre_header
                _
              $region42: #{skip_blocks_forward.2} parent=39 // loop_header
                %s164 = sphi 0, %s168
                %p165 = scmp.ge.s32.totalorder %s164, 1
                %s169 = sphi %s154, %s154
                %s170 = sphi %s150, %s150
              $region43: #{skip_blocks_forward.2} parent=39 // loop_header_branch
                %167 = sbr.rel (%p165) target = $region47
              $region44: #{skip_blocks_forward.2} parent=39 // loop_body
                %v171 = vld [vmem:[%s169] sm:%s162]
                %172 = vst [vmem:[%s170] sm:%s162] %v171
                %v173 = vld [vmem:[%s169 + $0x10] sm:%s162]
                %174 = vst [vmem:[%s170 + $0x8] sm:%s162] %v173
                %v175 = vld [vmem:[%s169 + $0x20] sm:%s162]
                %176 = vst [vmem:[%s170 + $0x10] sm:%s162] %v175
                %v177 = vld [vmem:[%s169 + $0x30] sm:%s162]
                %178 = vst [vmem:[%s170 + $0x18] sm:%s162] %v177
                %v179 = vld [vmem:[%s169 + $0x40] sm:%s162]
                %180 = vst [vmem:[%s170 + $0x20] sm:%s162] %v179
                %v181 = vld [vmem:[%s169 + $0x50] sm:%s162]
                %182 = vst [vmem:[%s170 + $0x28] sm:%s162] %v181
                %v183 = vld [vmem:[%s169 + $0x60] sm:%s162]
                %184 = vst [vmem:[%s170 + $0x30] sm:%s162] %v183
                %v185 = vld [vmem:[%s169 + $0x70] sm:%s162]
                %186 = vst [vmem:[%s170 + $0x38] sm:%s162] %v185
                %v187 = vld [vmem:[%s169 + $0x80] sm:%s162]
                %188 = vst [vmem:[%s170 + $0x40] sm:%s162] %v187
                %v189 = vld [vmem:[%s169 + $0x90] sm:%s162]
                %190 = vst [vmem:[%s170 + $0x48] sm:%s162] %v189
                %v191 = vld [vmem:[%s169 + $0xa0] sm:%s162]
                %192 = vst [vmem:[%s170 + $0x50] sm:%s162] %v191
                %v193 = vld [vmem:[%s169 + $0xb0] sm:%s162]
                %194 = vst [vmem:[%s170 + $0x58] sm:%s162] %v193
                %v195 = vld [vmem:[%s169 + $0xc0] sm:%s162]
                %196 = vst [vmem:[%s170 + $0x60] sm:%s162] %v195
                %v197 = vld [vmem:[%s169 + $0xd0] sm:%s162]
                %198 = vst [vmem:[%s170 + $0x68] sm:%s162] %v197
                %v199 = vld [vmem:[%s169 + $0xe0] sm:%s162]
                %200 = vst [vmem:[%s170 + $0x70] sm:%s162] %v199
                %v201 = vld [vmem:[%s169 + $0xf0] sm:%s162]
                %202 = vst [vmem:[%s170 + $0x78] sm:%s162] %v201
              $region45: #{skip_blocks_forward.2} parent=39 // loop_footer
                %s168 = sadd.s32 1, %s164
              $region46: #{skip_blocks_forward.2} parent=39 // loop_footer_branch
                %163 = sbr.rel target = $region42
              $region47: #{skip_blocks_forward.2} parent=39 // loop_exit
                _
            $region40: #{skip_blocks_forward.2} parent=31 // pred_fallthru
              _
          $region32: #{skip_blocks_forward.2} parent=27 // pred_fallthru
            _
          %247 = vnop
        $region28: #{skip_blocks_forward.2} parent=23 // pred_fallthru
          _
      $region24: #{skip_blocks_forward.2} parent=5 // pred_fallthru
        _
      %p248 = scmp.le.s32.totalorder 1, %s9
      %p249 = scmp.lt.s32.totalorder %s9, 5
      %p250 = pnand %p248, %p249
      %p251 = pneg %p250
      // Predicated region
      $region63: #{skip_blocks_forward.2} parent=5 // pred_check
        _
      $region64: #{skip_blocks_forward.2} parent=5 // pred_check_branch
        %253 = sbr.rel (%p250) target = $region66
      $region65: #{skip_blocks_forward.2} parent=5 // pred_region
        %s254 = ssub.s32 %s9, 1
        %s255 = sand.u32 %s36, 1
        %s256 = sand.u32 %s36, 1
        %s257 = smul.addr %s256, 128
        %s258 = scalar_lea.vmem [#allocation2], %s257
        // Predicated region
        $region67: #{skip_blocks_forward.2} parent=65 // pred_check
          %p259 = pneg %p49
        $region68: #{skip_blocks_forward.2} parent=65 // pred_check_branch
          %261 = sbr.rel (%p259) target = $region70
        $region69: #{skip_blocks_forward.2} parent=65 // pred_region
          _
        $region70: #{skip_blocks_forward.2} parent=65 // pred_fallthru
          _
        %s262 = sand.u32 %s36, 1
        %s263 = sand.u32 %s36, 1
        %s264 = smul.addr %s263, 128
        %s265 = scalar_lea.vmem [#allocation2], %s264
        %p266 = pneg %p49
        %p267 = pneg %p46
        %p268 = pneg %p70
        %p269 = pneg %p67
        %p270 = pneg %p91
        %p271 = pneg %p88
        %p272 = pneg %p119
        %p273 = pneg %p116
        %s274 = sand.u32 %s106, 1
        %s275 = sand.u32 %s106, 1
        %s276 = smul.addr %s275, 128
        %s277 = scalar_lea.vmem [#allocation3], %s276
        %v278 = vld [vmem:[%s258] sm:$0xff]
        %v279 = vld [vmem:[%s258 + $0x8] sm:$0xff]
        %v280 = vld [vmem:[%s258 + $0x10] sm:$0xff]
        %v281 = vld [vmem:[%s258 + $0x18] sm:$0xff]
        %v282 = vld [vmem:[%s258 + $0x20] sm:$0xff]
        %v283 = vld [vmem:[%s258 + $0x28] sm:$0xff]
        %v284 = vld [vmem:[%s258 + $0x30] sm:$0xff]
        %v285 = vld [vmem:[%s258 + $0x38] sm:$0xff]
        %v286 = vld [vmem:[%s258 + $0x40] sm:$0xff]
        %v287 = vld [vmem:[%s258 + $0x48] sm:$0xff]
        %v288 = vld [vmem:[%s258 + $0x50] sm:$0xff]
        %v289 = vld [vmem:[%s258 + $0x58] sm:$0xff]
        %v290 = vld [vmem:[%s258 + $0x60] sm:$0xff]
        %v291 = vld [vmem:[%s258 + $0x68] sm:$0xff]
        %v292 = vld [vmem:[%s258 + $0x70] sm:$0xff]
        %v293 = vld [vmem:[%s258 + $0x78] sm:$0xff]
        %v294 = vld [vmem:[%s1] sm:$0xf]
        %v295 = vld [vmem:[%s1 + $0x4] sm:$0xf]
        %v296 = vld [vmem:[%s1 + $0x8] sm:$0xf]
        %v297 = vld [vmem:[%s1 + $0xc] sm:$0xf]
        %v298 = vld [vmem:[%s1 + $0x10] sm:$0xf]
        %v299 = vld [vmem:[%s1 + $0x14] sm:$0xf]
        %v300 = vld [vmem:[%s1 + $0x18] sm:$0xf]
        %v301 = vld [vmem:[%s1 + $0x1c] sm:$0xf]
        %v302 = vld [vmem:[%s1 + $0x20] sm:$0xf]
        %v303 = vld [vmem:[%s1 + $0x24] sm:$0xf]
        %v304 = vld [vmem:[%s1 + $0x28] sm:$0xf]
        %v305 = vld [vmem:[%s1 + $0x2c] sm:$0xf]
        %v306 = vld [vmem:[%s1 + $0x30] sm:$0xf]
        %v307 = vld [vmem:[%s1 + $0x34] sm:$0xf]
        %v308 = vld [vmem:[%s1 + $0x38] sm:$0xf]
        %v309 = vld [vmem:[%s1 + $0x3c] sm:$0xf]
        %v310 = vpack.c.bf16 %v279, %v278
        %v311 = vpack.c.bf16 %v281, %v280
        %v312 = vpack.c.bf16 %v283, %v282
        %v313 = vpack.c.bf16 %v285, %v284
        %v314 = vpack.c.bf16 %v287, %v286
        %v315 = vpack.c.bf16 %v289, %v288
        %v316 = vpack.c.bf16 %v291, %v290
        %v317 = vpack.c.bf16 %v293, %v292
        %v318 = vld [vmem:[%s2] sm:$0xff]
        %v319 = vld [vmem:[%s2 + $0x8] sm:$0xff]
        %v320 = vld [vmem:[%s2 + $0x10] sm:$0xff]
        %v321 = vld [vmem:[%s2 + $0x18] sm:$0xff]
        %v322 = vld [vmem:[%s2 + $0x20] sm:$0xff]
        %v323 = vld [vmem:[%s2 + $0x28] sm:$0xff]
        %v324 = vld [vmem:[%s2 + $0x30] sm:$0xff]
        %v325 = vld [vmem:[%s2 + $0x38] sm:$0xff]
        %v326 = vld [vmem:[%s2 + $0x40] sm:$0xff]
        %v327 = vld [vmem:[%s2 + $0x48] sm:$0xff]
        %v328 = vld [vmem:[%s2 + $0x50] sm:$0xff]
        %v329 = vld [vmem:[%s2 + $0x58] sm:$0xff]
        %v330 = vld [vmem:[%s2 + $0x60] sm:$0xff]
        %v331 = vld [vmem:[%s2 + $0x68] sm:$0xff]
        %v332 = vld [vmem:[%s2 + $0x70] sm:$0xff]
        %v333 = vld [vmem:[%s2 + $0x78] sm:$0xff]
        %335 = vset.pattern.permute.xlu0 0
        %336 = vperm.xlu0 %335, %v318
        %v337 = vpop.permute.xlu0 %336
        %340 = vset.pattern.permute.xlu0 0
        %341 = vperm.xlu0 %340, %v319
        %v342 = vpop.permute.xlu0 %341
        %345 = vset.pattern.permute.xlu0 0
        %346 = vperm.xlu0 %345, %v320
        %v347 = vpop.permute.xlu0 %346
        %350 = vset.pattern.permute.xlu0 0
        %351 = vperm.xlu0 %350, %v321
        %v352 = vpop.permute.xlu0 %351
        %355 = vset.pattern.permute.xlu0 0
        %356 = vperm.xlu0 %355, %v322
        %v357 = vpop.permute.xlu0 %356
        %360 = vset.pattern.permute.xlu0 0
        %361 = vperm.xlu0 %360, %v323
        %v362 = vpop.permute.xlu0 %361
        %365 = vset.pattern.permute.xlu0 0
        %366 = vperm.xlu0 %365, %v324
        %v367 = vpop.permute.xlu0 %366
        %370 = vset.pattern.permute.xlu0 0
        %371 = vperm.xlu0 %370, %v325
        %v372 = vpop.permute.xlu0 %371
        %375 = vset.pattern.permute.xlu0 0
        %376 = vperm.xlu0 %375, %v326
        %v377 = vpop.permute.xlu0 %376
        %380 = vset.pattern.permute.xlu0 0
        %381 = vperm.xlu0 %380, %v327
        %v382 = vpop.permute.xlu0 %381
        %385 = vset.pattern.permute.xlu0 0
        %386 = vperm.xlu0 %385, %v328
        %v387 = vpop.permute.xlu0 %386
        %390 = vset.pattern.permute.xlu0 0
        %391 = vperm.xlu0 %390, %v329
        %v392 = vpop.permute.xlu0 %391
        %395 = vset.pattern.permute.xlu0 0
        %396 = vperm.xlu0 %395, %v330
        %v397 = vpop.permute.xlu0 %396
        %400 = vset.pattern.permute.xlu0 0
        %401 = vperm.xlu0 %400, %v331
        %v402 = vpop.permute.xlu0 %401
        %405 = vset.pattern.permute.xlu0 0
        %406 = vperm.xlu0 %405, %v332
        %v407 = vpop.permute.xlu0 %406
        %410 = vset.pattern.permute.xlu0 0
        %411 = vperm.xlu0 %410, %v333
        %v412 = vpop.permute.xlu0 %411
        %v430 = vunpack.c.l.b16 %v294
        %v431 = vunpack.c.l.b16 %v295
        %v432 = vunpack.c.l.b16 %v296
        %v433 = vunpack.c.l.b16 %v297
        %v434 = vunpack.c.l.b16 %v298
        %v435 = vunpack.c.l.b16 %v299
        %v436 = vunpack.c.l.b16 %v300
        %v437 = vunpack.c.l.b16 %v301
        %v438 = vunpack.c.l.b16 %v302
        %v439 = vunpack.c.l.b16 %v303
        %v440 = vunpack.c.l.b16 %v304
        %v441 = vunpack.c.l.b16 %v305
        %v442 = vunpack.c.l.b16 %v306
        %v443 = vunpack.c.l.b16 %v307
        %v444 = vunpack.c.l.b16 %v308
        %v445 = vunpack.c.l.b16 %v309
        %v446 = vpack.c.b16 %v431, %v430
        %v447 = vpack.c.b16 %v433, %v432
        %v448 = vpack.c.b16 %v435, %v434
        %v449 = vpack.c.b16 %v437, %v436
        %v450 = vpack.c.b16 %v439, %v438
        %v451 = vpack.c.b16 %v441, %v440
        %v452 = vpack.c.b16 %v443, %v442
        %v453 = vpack.c.b16 %v445, %v444
        %462 = vmatpush.bf16.msra.mxu0 %v317
        %463 = vmatpush.bf16.msra.mxu0 %v316
        %464 = vmatpush.bf16.msra.mxu0 %v315
        %465 = vmatpush.bf16.msra.mxu0 %v314
        %466 = vmatpush.bf16.msra.mxu0 %v313
        %467 = vmatpush.bf16.msra.mxu0 %v312
        %468 = vmatpush.bf16.msra.mxu0 %v311
        %469 = vmatpush.bf16.msra.mxu0 %v310
        %470 = vmatmul.bf16.gmra.mxu0 %v446
        %v471 = vpop.f32.mrf.mxu0
        %v472 = vadd.f32 %v337, %v471
        %v473 = vpop.f32.mrf.mxu0
        %v474 = vadd.f32 %v342, %v473
        %475 = vmatmul.bf16.gmra.mxu0 %v447
        %v476 = vpop.f32.mrf.mxu0
        %v477 = vadd.f32 %v347, %v476
        %v478 = vpop.f32.mrf.mxu0
        %v479 = vadd.f32 %v352, %v478
        %480 = vmatmul.bf16.gmra.mxu0 %v448
        %v481 = vpop.f32.mrf.mxu0
        %v482 = vadd.f32 %v357, %v481
        %v483 = vpop.f32.mrf.mxu0
        %v484 = vadd.f32 %v362, %v483
        %485 = vmatmul.bf16.gmra.mxu0 %v449
        %v486 = vpop.f32.mrf.mxu0
        %v487 = vadd.f32 %v367, %v486
        %v488 = vpop.f32.mrf.mxu0
        %v489 = vadd.f32 %v372, %v488
        %490 = vmatmul.bf16.gmra.mxu0 %v450
        %v491 = vpop.f32.mrf.mxu0
        %v492 = vadd.f32 %v377, %v491
        %v493 = vpop.f32.mrf.mxu0
        %v494 = vadd.f32 %v382, %v493
        %495 = vmatmul.bf16.gmra.mxu0 %v451
        %v496 = vpop.f32.mrf.mxu0
        %v497 = vadd.f32 %v387, %v496
        %v498 = vpop.f32.mrf.mxu0
        %v499 = vadd.f32 %v392, %v498
        %500 = vmatmul.bf16.gmra.mxu0 %v452
        %v501 = vpop.f32.mrf.mxu0
        %v502 = vadd.f32 %v397, %v501
        %v503 = vpop.f32.mrf.mxu0
        %v504 = vadd.f32 %v402, %v503
        %505 = vmatmul.bf16.gmra.mxu0 %v453
        %v506 = vpop.f32.mrf.mxu0
        %v507 = vadd.f32 %v407, %v506
        %v508 = vpop.f32.mrf.mxu0
        %v509 = vadd.f32 %v412, %v508
        %510 = vdwg.mxu0
        %v511 = vadd.f32 %v472, %v278
        %v512 = vadd.f32 %v474, %v279
        %v513 = vadd.f32 %v477, %v280
        %v514 = vadd.f32 %v479, %v281
        %v515 = vadd.f32 %v482, %v282
        %v516 = vadd.f32 %v484, %v283
        %v517 = vadd.f32 %v487, %v284
        %v518 = vadd.f32 %v489, %v285
        %v519 = vadd.f32 %v492, %v286
        %v520 = vadd.f32 %v494, %v287
        %v521 = vadd.f32 %v497, %v288
        %v522 = vadd.f32 %v499, %v289
        %v523 = vadd.f32 %v502, %v290
        %v524 = vadd.f32 %v504, %v291
        %v525 = vadd.f32 %v507, %v292
        %v526 = vadd.f32 %v509, %v293
        %527 = vst [vmem:[%s277] sm:$0xff] %v511
        %528 = vst [vmem:[%s277 + $0x8] sm:$0xff] %v512
        %529 = vst [vmem:[%s277 + $0x10] sm:$0xff] %v513
        %530 = vst [vmem:[%s277 + $0x18] sm:$0xff] %v514
        %531 = vst [vmem:[%s277 + $0x20] sm:$0xff] %v515
        %532 = vst [vmem:[%s277 + $0x28] sm:$0xff] %v516
        %533 = vst [vmem:[%s277 + $0x30] sm:$0xff] %v517
        %534 = vst [vmem:[%s277 + $0x38] sm:$0xff] %v518
        %535 = vst [vmem:[%s277 + $0x40] sm:$0xff] %v519
        %536 = vst [vmem:[%s277 + $0x48] sm:$0xff] %v520
        %537 = vst [vmem:[%s277 + $0x50] sm:$0xff] %v521
        %538 = vst [vmem:[%s277 + $0x58] sm:$0xff] %v522
        %539 = vst [vmem:[%s277 + $0x60] sm:$0xff] %v523
        %540 = vst [vmem:[%s277 + $0x68] sm:$0xff] %v524
        %541 = vst [vmem:[%s277 + $0x70] sm:$0xff] %v525
        %542 = vst [vmem:[%s277 + $0x78] sm:$0xff] %v526
        %s543 = sand.u32 %s106, 1
        %s544 = sand.u32 %s106, 1
        %s545 = smul.addr %s544, 128
        %s546 = scalar_lea.vmem [#allocation3], %s545
        // Predicated region
        $region71: #{skip_blocks_forward.2} parent=65 // pred_check
          %p547 = pneg %p116
        $region72: #{skip_blocks_forward.2} parent=65 // pred_check_branch
          %549 = sbr.rel (%p547) target = $region74
        $region73: #{skip_blocks_forward.2} parent=65 // pred_region
          %s550 = smul.addr %s18, 32
          %s551 = sadd.s32 %s19, %s550
          %s552 = smul.addr %s551, 8
          %s553 = scalar_lea.vmem %s3, %s552
          // Predicated region
          $region75: #{skip_blocks_forward.2} parent=73 // pred_check
            _
          $region76: #{skip_blocks_forward.2} parent=73 // pred_check_branch
            %555 = sbr.rel (0) target = $region78
          $region77: #{skip_blocks_forward.2} parent=73 // pred_region
            // Predicated region
            $region79: #{skip_blocks_forward.2} parent=77 // pred_check
              _
            $region80: #{skip_blocks_forward.2} parent=77 // pred_check_branch
              %557 = sbr.rel (0) target = $region82
            $region81: #{skip_blocks_forward.2} parent=77 // pred_region
              // Predicated region
              $region94: #{skip_blocks_forward.2} parent=81 // pred_check
                _
              $region95: #{skip_blocks_forward.2} parent=81 // pred_check_branch
                %603 = sbr.rel (0) target = $region97
              $region96: #{skip_blocks_forward.2} parent=81 // pred_region
                loop: start=0, step=1, limit=1
                $region98: #{skip_blocks_forward.2} parent=96 // loop_pre_header
                  _
                $region99: #{skip_blocks_forward.2} parent=96 // loop_header
                  %s605 = sphi 0, %s609
                  %p606 = scmp.ge.s32.totalorder %s605, 1
                  %s610 = sphi %s546, %s546
                  %s611 = sphi %s553, %s553
                $region100: #{skip_blocks_forward.2} parent=96 // loop_header_branch
                  %608 = sbr.rel (%p606) target = $region104
                $region101: #{skip_blocks_forward.2} parent=96 // loop_body
                  %v612 = vld [vmem:[%s610] sm:$0xff]
                  %613 = vst [vmem:[%s611] sm:$0xff] %v612
                  %v614 = vld [vmem:[%s610 + $0x8] sm:$0xff]
                  %615 = vst [vmem:[%s611 + $0x10] sm:$0xff] %v614
                  %v616 = vld [vmem:[%s610 + $0x10] sm:$0xff]
                  %617 = vst [vmem:[%s611 + $0x20] sm:$0xff] %v616
                  %v618 = vld [vmem:[%s610 + $0x18] sm:$0xff]
                  %619 = vst [vmem:[%s611 + $0x30] sm:$0xff] %v618
                  %v620 = vld [vmem:[%s610 + $0x20] sm:$0xff]
                  %621 = vst [vmem:[%s611 + $0x40] sm:$0xff] %v620
                  %v622 = vld [vmem:[%s610 + $0x28] sm:$0xff]
                  %623 = vst [vmem:[%s611 + $0x50] sm:$0xff] %v622
                  %v624 = vld [vmem:[%s610 + $0x30] sm:$0xff]
                  %625 = vst [vmem:[%s611 + $0x60] sm:$0xff] %v624
                  %v626 = vld [vmem:[%s610 + $0x38] sm:$0xff]
                  %627 = vst [vmem:[%s611 + $0x70] sm:$0xff] %v626
                  %v628 = vld [vmem:[%s610 + $0x40] sm:$0xff]
                  %629 = vst [vmem:[%s611 + $0x80] sm:$0xff] %v628
                  %v630 = vld [vmem:[%s610 + $0x48] sm:$0xff]
                  %631 = vst [vmem:[%s611 + $0x90] sm:$0xff] %v630
                  %v632 = vld [vmem:[%s610 + $0x50] sm:$0xff]
                  %633 = vst [vmem:[%s611 + $0xa0] sm:$0xff] %v632
                  %v634 = vld [vmem:[%s610 + $0x58] sm:$0xff]
                  %635 = vst [vmem:[%s611 + $0xb0] sm:$0xff] %v634
                  %v636 = vld [vmem:[%s610 + $0x60] sm:$0xff]
                  %637 = vst [vmem:[%s611 + $0xc0] sm:$0xff] %v636
                  %v638 = vld [vmem:[%s610 + $0x68] sm:$0xff]
                  %639 = vst [vmem:[%s611 + $0xd0] sm:$0xff] %v638
                  %v640 = vld [vmem:[%s610 + $0x70] sm:$0xff]
                  %641 = vst [vmem:[%s611 + $0xe0] sm:$0xff] %v640
                  %v642 = vld [vmem:[%s610 + $0x78] sm:$0xff]
                  %643 = vst [vmem:[%s611 + $0xf0] sm:$0xff] %v642
                $region102: #{skip_blocks_forward.2} parent=96 // loop_footer
                  %s609 = sadd.s32 1, %s605
                $region103: #{skip_blocks_forward.2} parent=96 // loop_footer_branch
                  %604 = sbr.rel target = $region99
                $region104: #{skip_blocks_forward.2} parent=96 // loop_exit
                  _
              $region97: #{skip_blocks_forward.2} parent=81 // pred_fallthru
                _
              // Predicated region
              $region105: #{skip_blocks_forward.2} parent=81 // pred_check
                _
              $region106: #{skip_blocks_forward.2} parent=81 // pred_check_branch
                %645 = sbr.rel target = $region108
              $region107: #{skip_blocks_forward.2} parent=81 // pred_region
                _
              $region108: #{skip_blocks_forward.2} parent=81 // pred_fallthru
                _
            $region82: #{skip_blocks_forward.2} parent=77 // pred_fallthru
              _
            // Predicated region
            $region83: #{skip_blocks_forward.2} parent=77 // pred_check
              _
            $region84: #{skip_blocks_forward.2} parent=77 // pred_check_branch
              %559 = sbr.rel target = $region86
            $region85: #{skip_blocks_forward.2} parent=77 // pred_region
              %s561 = ssub.s32 256, 1
              loop: start=0, step=1, limit=1
              $region87: #{skip_blocks_forward.2} parent=85 // loop_pre_header
                _
              $region88: #{skip_blocks_forward.2} parent=85 // loop_header
                %s563 = sphi 0, %s567
                %p564 = scmp.ge.s32.totalorder %s563, 1
                %s568 = sphi %s546, %s546
                %s569 = sphi %s553, %s553
              $region89: #{skip_blocks_forward.2} parent=85 // loop_header_branch
                %566 = sbr.rel (%p564) target = $region93
              $region90: #{skip_blocks_forward.2} parent=85 // loop_body
                %v570 = vld [vmem:[%s568] sm:%s561]
                %571 = vst [vmem:[%s569] sm:%s561] %v570
                %v572 = vld [vmem:[%s568 + $0x8] sm:%s561]
                %573 = vst [vmem:[%s569 + $0x10] sm:%s561] %v572
                %v574 = vld [vmem:[%s568 + $0x10] sm:%s561]
                %575 = vst [vmem:[%s569 + $0x20] sm:%s561] %v574
                %v576 = vld [vmem:[%s568 + $0x18] sm:%s561]
                %577 = vst [vmem:[%s569 + $0x30] sm:%s561] %v576
                %v578 = vld [vmem:[%s568 + $0x20] sm:%s561]
                %579 = vst [vmem:[%s569 + $0x40] sm:%s561] %v578
                %v580 = vld [vmem:[%s568 + $0x28] sm:%s561]
                %581 = vst [vmem:[%s569 + $0x50] sm:%s561] %v580
                %v582 = vld [vmem:[%s568 + $0x30] sm:%s561]
                %583 = vst [vmem:[%s569 + $0x60] sm:%s561] %v582
                %v584 = vld [vmem:[%s568 + $0x38] sm:%s561]
                %585 = vst [vmem:[%s569 + $0x70] sm:%s561] %v584
                %v586 = vld [vmem:[%s568 + $0x40] sm:%s561]
                %587 = vst [vmem:[%s569 + $0x80] sm:%s561] %v586
                %v588 = vld [vmem:[%s568 + $0x48] sm:%s561]
                %589 = vst [vmem:[%s569 + $0x90] sm:%s561] %v588
                %v590 = vld [vmem:[%s568 + $0x50] sm:%s561]
                %591 = vst [vmem:[%s569 + $0xa0] sm:%s561] %v590
                %v592 = vld [vmem:[%s568 + $0x58] sm:%s561]
                %593 = vst [vmem:[%s569 + $0xb0] sm:%s561] %v592
                %v594 = vld [vmem:[%s568 + $0x60] sm:%s561]
                %595 = vst [vmem:[%s569 + $0xc0] sm:%s561] %v594
                %v596 = vld [vmem:[%s568 + $0x68] sm:%s561]
                %597 = vst [vmem:[%s569 + $0xd0] sm:%s561] %v596
                %v598 = vld [vmem:[%s568 + $0x70] sm:%s561]
                %599 = vst [vmem:[%s569 + $0xe0] sm:%s561] %v598
                %v600 = vld [vmem:[%s568 + $0x78] sm:%s561]
                %601 = vst [vmem:[%s569 + $0xf0] sm:%s561] %v600
              $region91: #{skip_blocks_forward.2} parent=85 // loop_footer
                %s567 = sadd.s32 1, %s563
              $region92: #{skip_blocks_forward.2} parent=85 // loop_footer_branch
                %562 = sbr.rel target = $region88
              $region93: #{skip_blocks_forward.2} parent=85 // loop_exit
                _
            $region86: #{skip_blocks_forward.2} parent=77 // pred_fallthru
              _
          $region78: #{skip_blocks_forward.2} parent=73 // pred_fallthru
            _
          %646 = vnop
        $region74: #{skip_blocks_forward.2} parent=65 // pred_fallthru
          _
      $region66: #{skip_blocks_forward.2} parent=5 // pred_fallthru
        _
      %p647 = scmp.le.s32.totalorder 2, %s9
      // Predicated region
      $region109: #{skip_blocks_forward.2} parent=5 // pred_check
        %p648 = pneg %p647
      $region110: #{skip_blocks_forward.2} parent=5 // pred_check_branch
        %650 = sbr.rel (%p648) target = $region112
      $region111: #{skip_blocks_forward.2} parent=5 // pred_region
        %s651 = ssub.s32 %s9, 2
        // Predicated region
        $region113: #{skip_blocks_forward.2} parent=111 // pred_check
          %p652 = pneg %p122
        $region114: #{skip_blocks_forward.2} parent=111 // pred_check_branch
          %654 = sbr.rel (%p652) target = $region116
        $region115: #{skip_blocks_forward.2} parent=111 // pred_region
          %s655 = sand.u32 %s107, 1
          %s656 = sand.u32 %s107, 1
          %s657 = smul.addr %s656, 128
          %s658 = scalar_lea.vmem [#allocation3], %s657
        $region116: #{skip_blocks_forward.2} parent=111 // pred_fallthru
          _
      $region112: #{skip_blocks_forward.2} parent=5 // pred_fallthru
        _
    $region6: #{skip_blocks_forward.2} parent=1 // loop_footer
      %s13 = sadd.s32 1, %s9
    $region7: #{skip_blocks_forward.2} parent=1 // loop_footer_branch
      %8 = sbr.rel target = $region3
    $region8: #{skip_blocks_forward.2} parent=1 // loop_exit
      _

</llo_original>
